<compile_context>
chip_gen: v7x
topology: tpu7x:2x2x1
jax: 0.10.0
libtpu: 0.0.40
codegen_flags: <defaults>
</compile_context>

<pallas_src>
import functools

import jax
import jax.numpy as jnp
from jax.experimental import pallas as pl
from jax.experimental.pallas import tpu as pltpu


def _round_up(v, m):
    return (v + m - 1) // m * m


def _choose_row_tiling(n, max_tm=512):
    """Pick a sublane-aligned row block size.

    Blocks are kept large (<= max_tm rows, amortizing the ~0.35us per-grid-step cost)
    while the grid keeps >= 2 steps whenever N allows so the "parallel" axis can shard
    across v7x's two TensorCores.  Rows are padded only to a multiple of 8.
    """
    np8 = _round_up(max(n, 1), 8)
    nblk = max(pl.cdiv(np8, max_tm), 2 if np8 > 8 else 1)
    tm = _round_up(pl.cdiv(np8, nblk), 8)
    np_rows = _round_up(np8, tm)
    return tm, np_rows, np_rows // tm


def linear_relu_stats_kernel(x_ref, w_ref, b_ref, stats_ref, *, tm, n_valid):
    """Per row-block: compute relu(x @ W + b) in-register, emit packed sum / sumsq."""
    i = pl.program_id(0)
    y = jnp.dot(x_ref[...], w_ref[...], preferred_element_type=jnp.float32)  # MXU, f32 acc
    y = jnp.maximum(y + b_ref[...], 0.0)                                     # [TM, Dp_out]

    riota = jax.lax.broadcasted_iota(jnp.int32, stats_ref.shape, 0)

    def emit(yv):
        s = jnp.sum(yv, axis=0, keepdims=True)          # [1, Dp_out]
        ss = jnp.sum(yv * yv, axis=0, keepdims=True)    # [1, Dp_out]
        # Packed stats block: row 0 = sum, rows 1..7 = sum of squares.
        stats_ref[...] = jnp.where(riota == 0, s, ss)

    last = pl.num_programs(0) - 1

    @pl.when(i < last)
    def _():
        emit(y)                                          # common path: no mask work

    @pl.when(i == last)
    def _():
        # Only the final row block can contain zero-padded rows; mask them so they
        # do not pollute the batch statistics.
        row = i * tm + jax.lax.broadcasted_iota(jnp.int32, y.shape, 0)
        emit(jnp.where(row < n_valid, y, 0.0))


def linear_relu_affine_kernel(x_ref, w_ref, b_ref, scale_ref, shift_ref, o_ref):
    """Per row-block: recompute relu(x @ W + b) and apply folded BN scale/shift."""
    y = jnp.dot(x_ref[...], w_ref[...], preferred_element_type=jnp.float32)
    y = jnp.maximum(y + b_ref[...], 0.0)
    o_ref[...] = y * scale_ref[...] + shift_ref[...]


def prepare_linear_batchnorm1d_params(weight, bias, gamma, beta):
    """One-time repack of layer parameters: transpose + zero-pad + bf16 cast of W,
    zero-padded f32 bias/gamma/beta.  Hoisted out of the per-forward path."""
    d_out, d_in = weight.shape
    dp_in = _round_up(d_in, 128)
    dp_out = _round_up(d_out, 128)
    w_p = jnp.zeros((dp_in, dp_out), jnp.bfloat16).at[:d_in, :d_out].set(
        weight.T.astype(jnp.bfloat16))
    b_p = jnp.zeros((1, dp_out), jnp.float32).at[0, :d_out].set(bias.astype(jnp.float32))
    gamma_p = jnp.zeros((1, dp_out), jnp.float32).at[0, :d_out].set(
        gamma.astype(jnp.float32))
    beta_p = jnp.zeros((1, dp_out), jnp.float32).at[0, :d_out].set(
        beta.astype(jnp.float32))
    return w_p, b_p, gamma_p, beta_p


@functools.partial(jax.jit, static_argnames=("d_out", "eps"))
def linear_batchnorm1d_forward(x, w_p, b_p, gamma_p, beta_p, *, d_out, eps=1e-6):
    """x: [N, D_in] f32; w_p/b_p/gamma_p/beta_p from prepare_linear_batchnorm1d_params."""
    n, d_in = x.shape
    dp_in, dp_out = w_p.shape
    tm, np_rows, g = _choose_row_tiling(n)

    # Pad rows to the block grid and cast the MXU operand to bf16 (f32 accumulation
    # happens in-kernel).  Feature dim padded to 128 -> lane-dense loads/stores.
    x_p = jnp.zeros((np_rows, dp_in), jnp.bfloat16).at[:n, :d_in].set(
        x.astype(jnp.bfloat16))

    # Rough VMEM estimate (double-buffered x/out tiles + resident-but-double-buffered W
    # + stats).  Only raise the scoped limit when defaults (16 MiB on v5e) would bind.
    vmem_bytes = (2 * tm * dp_in * 2 + 2 * dp_in * dp_out * 2
                  + 2 * tm * dp_out * 4 + 2 * 8 * dp_out * 4 + 4096)
    vmem_limit = None if vmem_bytes < 12 * 2**20 else min(2 * vmem_bytes, 96 * 2**20)
    cparams = pltpu.CompilerParams(
        dimension_semantics=("parallel",),   # row blocks shard over 2 TCs on v7x
        vmem_limit_bytes=vmem_limit)

    # Pass 1: per-block packed BatchNorm statistics (no y writeback).
    kernel1 = functools.partial(linear_relu_stats_kernel, tm=tm, n_valid=n)
    stats = pl.pallas_call(
        kernel1,
        grid=(g,),
        in_specs=(
            pl.BlockSpec((tm, dp_in), lambda i: (i, 0)),       # x row tile (streamed)
            pl.BlockSpec((dp_in, dp_out), lambda i: (0, 0)),   # W (kept resident)
            pl.BlockSpec((1, dp_out), lambda i: (0, 0)),       # bias
        ),
        out_specs=pl.BlockSpec((8, dp_out), lambda i: (i, 0)),  # packed stats block
        out_shape=jax.ShapeDtypeStruct((8 * g, dp_out), jnp.float32),
        compiler_params=cparams,
    )(x_p, w_p, b_p)

    # Tiny [G, Dp_out] reduction + fold BatchNorm into one per-feature scale/shift.
    stats = stats.reshape(g, 8, dp_out)
    total = stats[:, 0, :].sum(axis=0)
    totsq = stats[:, 1, :].sum(axis=0)
    mean = total / n
    var = jnp.maximum(totsq / n - mean * mean, 0.0)   # biased var (training-mode BN)
    scale = gamma_p * jax.lax.rsqrt(var + eps)        # [1, Dp_out]
    shift = beta_p - mean * scale                     # [1, Dp_out]

    # Pass 2: recompute relu(x@W+b) (free while HBM-bound) and apply the affine.
    out = pl.pallas_call(
        linear_relu_affine_kernel,
        grid=(g,),
        in_specs=(
            pl.BlockSpec((tm, dp_in), lambda i: (i, 0)),
            pl.BlockSpec((dp_in, dp_out), lambda i: (0, 0)),
            pl.BlockSpec((1, dp_out), lambda i: (0, 0)),
            pl.BlockSpec((1, dp_out), lambda i: (0, 0)),
            pl.BlockSpec((1, dp_out), lambda i: (0, 0)),
        ),
        out_specs=pl.BlockSpec((tm, dp_out), lambda i: (i, 0)),
        out_shape=jax.ShapeDtypeStruct((np_rows, dp_out), jnp.float32),
        compiler_params=cparams,
    )(x_p, w_p, b_p, scale, shift)

    return out[:n, :d_out].astype(x.dtype)


if __name__ == "__main__":
    # Small shapes consistent with the module: a batch of 200 feature vectors,
    # node_dim = output_dim = 32 (N deliberately not a multiple of 8*? tiles to
    # exercise the row-padding / stats-masking / adaptive-tiling path).
    N, D_IN, D_OUT = 200, 32, 32

    key = jax.random.PRNGKey(0)
    kx, kw, kb = jax.random.split(key, 3)

    x = jax.random.normal(kx, (N, D_IN), jnp.float32)
    # PyTorch nn.Linear default init: kaiming_uniform(a=sqrt(5)) -> U(-1/sqrt(fan_in), +)
    bound = 1.0 / float(jnp.sqrt(jnp.float32(D_IN)))
    weight = jax.random.uniform(kw, (D_OUT, D_IN), jnp.float32, -bound, bound)
    bias = jax.random.uniform(kb, (D_OUT,), jnp.float32, -bound, bound)
    gamma = jnp.ones((D_OUT,), jnp.float32)      # BatchNorm1d affine defaults
    beta = jnp.zeros((D_OUT,), jnp.float32)

    # One-time parameter repack (hoisted out of the forward path).
    w_p, b_p, gamma_p, beta_p = prepare_linear_batchnorm1d_params(weight, bias, gamma, beta)

    out = linear_batchnorm1d_forward(x, w_p, b_p, gamma_p, beta_p, d_out=D_OUT)
    jax.block_until_ready(out)
    assert out.shape == (N, D_OUT)

    # Pure-JAX reference (same bf16 matmul operands, f32 accumulation, training-mode BN).
    y_ref = jnp.maximum(
        jnp.dot(x.astype(jnp.bfloat16), weight.T.astype(jnp.bfloat16),
                preferred_element_type=jnp.float32) + bias, 0.0)
    mean_r = y_ref.mean(axis=0)
    var_r = y_ref.var(axis=0)                    # biased variance
    ref = gamma * (y_ref - mean_r) * jax.lax.rsqrt(var_r + 1e-6) + beta

    assert jnp.allclose(out, ref, rtol=1e-2, atol=1e-2), float(
        jnp.max(jnp.abs(out - ref)))
    print("KERNEL_OK")
</pallas_src>

<mosaic_0001>
module attributes {stable_mosaic.version = 11 : i64} {
  func.func @linear_relu_stats_kernel(%arg0: i32, %arg1: memref<104x128xbf16, #tpu.memory_space<vmem>>, %arg2: memref<128x128xbf16, #tpu.memory_space<vmem>>, %arg3: memref<1x128xf32, #tpu.memory_space<vmem>>, %arg4: memref<8x128xf32, #tpu.memory_space<vmem>>) attributes {dimension_semantics = [#tpu.dimension_semantics<parallel>], iteration_bounds = array<i64: 2>, scalar_prefetch = 0 : i64, scratch_operands = 0 : i64, tpu.core_type = #tpu.core_type<tc>, window_params = [{transform_indices = @transform_0, window_bounds = array<i64: 104, 128>}, {pipeline_mode = #tpu.pipeline_mode<synchronous>, transform_indices = @transform_1, window_bounds = array<i64: 128, 128>}, {pipeline_mode = #tpu.pipeline_mode<synchronous>, transform_indices = @transform_2, window_bounds = array<i64: 1, 128>}, {transform_indices = @transform_3, window_bounds = array<i64: 8, 128>}]} {
    %c0 = arith.constant 0 : index
    %c0_0 = arith.constant 0 : index
    %0 = vector.load %arg1[%c0, %c0_0] : memref<104x128xbf16, #tpu.memory_space<vmem>>, vector<104x128xbf16>
    %c0_1 = arith.constant 0 : index
    %c0_2 = arith.constant 0 : index
    %1 = vector.load %arg2[%c0_1, %c0_2] : memref<128x128xbf16, #tpu.memory_space<vmem>>, vector<128x128xbf16>
    %cst = arith.constant dense<0.000000e+00> : vector<104x128xf32>
    %2 = tpu.matmul %0, %1, %cst {dimension_numbers = #tpu.dot_dimension_numbers<[1], [0], [0], [1], [0, 0, 1, 1], [], []>} : vector<104x128xbf16>, vector<128x128xbf16>, vector<104x128xf32> -> vector<104x128xf32>
    %c0_3 = arith.constant 0 : index
    %c0_4 = arith.constant 0 : index
    %3 = vector.load %arg3[%c0_3, %c0_4] : memref<1x128xf32, #tpu.memory_space<vmem>>, vector<1x128xf32>
    %4 = vector.broadcast %3 : vector<1x128xf32> to vector<104x128xf32>
    %5 = arith.addf %2, %4 : vector<104x128xf32>
    %cst_5 = arith.constant 0.000000e+00 : f32
    %6 = vector.broadcast %cst_5 : f32 to vector<104x128xf32>
    %7 = arith.maximumf %5, %6 : vector<104x128xf32>
    %8 = tpu.iota {dimensions = array<i32: 0>} : vector<8x128xi32>
    %c1_i32 = arith.constant 1 : i32
    %9 = arith.cmpi slt, %arg0, %c1_i32 : i32
    %10 = arith.extui %9 : i1 to i32
    %c0_i32 = arith.constant 0 : i32
    %11 = arith.cmpi ne, %10, %c0_i32 : i32
    scf.if %11 {
      %cst_8 = arith.constant dense<0.000000e+00> : vector<128xf32>
      %15 = vector.multi_reduction <add>, %7, %cst_8 [0] : vector<104x128xf32> to vector<128xf32>
      %16 = vector.shape_cast %15 : vector<128xf32> to vector<1x128xf32>
      %17 = arith.mulf %7, %7 : vector<104x128xf32>
      %cst_9 = arith.constant dense<0.000000e+00> : vector<128xf32>
      %18 = vector.multi_reduction <add>, %17, %cst_9 [0] : vector<104x128xf32> to vector<128xf32>
      %19 = vector.shape_cast %18 : vector<128xf32> to vector<1x128xf32>
      %c0_i32_10 = arith.constant 0 : i32
      %20 = vector.broadcast %c0_i32_10 : i32 to vector<8x128xi32>
      %21 = arith.cmpi eq, %8, %20 : vector<8x128xi32>
      %22 = vector.shape_cast %16 : vector<1x128xf32> to vector<1x128xf32>
      %23 = vector.broadcast %22 : vector<1x128xf32> to vector<8x128xf32>
      %24 = vector.shape_cast %19 : vector<1x128xf32> to vector<1x128xf32>
      %25 = vector.broadcast %24 : vector<1x128xf32> to vector<8x128xf32>
      %26 = arith.select %21, %23, %25 : vector<8x128xi1>, vector<8x128xf32>
      %c0_11 = arith.constant 0 : index
      %c0_12 = arith.constant 0 : index
      %27 = vector.load %arg4[%c0_11, %c0_12] : memref<8x128xf32, #tpu.memory_space<vmem>>, vector<8x128xf32>
      tpu.vector_store %arg4[%c0_11, %c0_12], %26 {strides = array<i32>} : memref<8x128xf32, #tpu.memory_space<vmem>>, vector<8x128xf32>,
    } else {
    }
    %c1_i32_6 = arith.constant 1 : i32
    %12 = arith.cmpi eq, %arg0, %c1_i32_6 : i32
    %13 = arith.extui %12 : i1 to i32
    %c0_i32_7 = arith.constant 0 : i32
    %14 = arith.cmpi ne, %13, %c0_i32_7 : i32
    scf.if %14 {
      %c104_i32 = arith.constant 104 : i32
      %15 = arith.muli %arg0, %c104_i32 : i32
      %16 = tpu.iota {dimensions = array<i32: 0>} : vector<104x128xi32>
      %17 = vector.broadcast %15 : i32 to vector<104x128xi32>
      %18 = arith.addi %17, %16 : vector<104x128xi32>
      %c200_i32 = arith.constant 200 : i32
      %19 = vector.broadcast %c200_i32 : i32 to vector<104x128xi32>
      %20 = arith.cmpi slt, %18, %19 : vector<104x128xi32>
      %cst_8 = arith.constant 0.000000e+00 : f32
      %21 = vector.broadcast %cst_8 : f32 to vector<104x128xf32>
      %22 = arith.select %20, %7, %21 : vector<104x128xi1>, vector<104x128xf32>
      %cst_9 = arith.constant dense<0.000000e+00> : vector<128xf32>
      %23 = vector.multi_reduction <add>, %22, %cst_9 [0] : vector<104x128xf32> to vector<128xf32>
      %24 = vector.shape_cast %23 : vector<128xf32> to vector<1x128xf32>
      %25 = arith.mulf %22, %22 : vector<104x128xf32>
      %cst_10 = arith.constant dense<0.000000e+00> : vector<128xf32>
      %26 = vector.multi_reduction <add>, %25, %cst_10 [0] : vector<104x128xf32> to vector<128xf32>
      %27 = vector.shape_cast %26 : vector<128xf32> to vector<1x128xf32>
      %c0_i32_11 = arith.constant 0 : i32
      %28 = vector.broadcast %c0_i32_11 : i32 to vector<8x128xi32>
      %29 = arith.cmpi eq, %8, %28 : vector<8x128xi32>
      %30 = vector.shape_cast %24 : vector<1x128xf32> to vector<1x128xf32>
      %31 = vector.broadcast %30 : vector<1x128xf32> to vector<8x128xf32>
      %32 = vector.shape_cast %27 : vector<1x128xf32> to vector<1x128xf32>
      %33 = vector.broadcast %32 : vector<1x128xf32> to vector<8x128xf32>
      %34 = arith.select %29, %31, %33 : vector<8x128xi1>, vector<8x128xf32>
      %c0_12 = arith.constant 0 : index
      %c0_13 = arith.constant 0 : index
      %35 = vector.load %arg4[%c0_12, %c0_13] : memref<8x128xf32, #tpu.memory_space<vmem>>, vector<8x128xf32>
      tpu.vector_store %arg4[%c0_12, %c0_13], %34 {strides = array<i32>} : memref<8x128xf32, #tpu.memory_space<vmem>>, vector<8x128xf32>,
    } else {
    }
    return
  }
  func.func @transform_0(%arg0: i32) -> (i32, i32) {
    %c0_i32 = arith.constant 0 : i32
    %c0_i32_0 = arith.constant 0 : i32
    return %arg0, %c0_i32 : i32, i32
  }
  func.func @transform_1(%arg0: i32) -> (i32, i32) {
    %c0_i32 = arith.constant 0 : i32
    %c0_i32_0 = arith.constant 0 : i32
    %c0_i32_1 = arith.constant 0 : i32
    return %c0_i32, %c0_i32_0 : i32, i32
  }
  func.func @transform_2(%arg0: i32) -> (i32, i32) {
    %c0_i32 = arith.constant 0 : i32
    %c0_i32_0 = arith.constant 0 : i32
    %c0_i32_1 = arith.constant 0 : i32
    return %c0_i32, %c0_i32_0 : i32, i32
  }
  func.func @transform_3(%arg0: i32) -> (i32, i32) {
    %c0_i32 = arith.constant 0 : i32
    %c0_i32_0 = arith.constant 0 : i32
    return %arg0, %c0_i32 : i32, i32
  }
}

module attributes {stable_mosaic.version = 11 : i64} {
  func.func @linear_relu_affine_kernel(%arg0: i32, %arg1: memref<104x128xbf16, #tpu.memory_space<vmem>>, %arg2: memref<128x128xbf16, #tpu.memory_space<vmem>>, %arg3: memref<1x128xf32, #tpu.memory_space<vmem>>, %arg4: memref<1x128xf32, #tpu.memory_space<vmem>>, %arg5: memref<1x128xf32, #tpu.memory_space<vmem>>, %arg6: memref<104x128xf32, #tpu.memory_space<vmem>>) attributes {dimension_semantics = [#tpu.dimension_semantics<parallel>], iteration_bounds = array<i64: 2>, scalar_prefetch = 0 : i64, scratch_operands = 0 : i64, tpu.core_type = #tpu.core_type<tc>, window_params = [{transform_indices = @transform_0, window_bounds = array<i64: 104, 128>}, {pipeline_mode = #tpu.pipeline_mode<synchronous>, transform_indices = @transform_1, window_bounds = array<i64: 128, 128>}, {pipeline_mode = #tpu.pipeline_mode<synchronous>, transform_indices = @transform_2, window_bounds = array<i64: 1, 128>}, {pipeline_mode = #tpu.pipeline_mode<synchronous>, transform_indices = @transform_3, window_bounds = array<i64: 1, 128>}, {pipeline_mode = #tpu.pipeline_mode<synchronous>, transform_indices = @transform_4, window_bounds = array<i64: 1, 128>}, {transform_indices = @transform_5, window_bounds = array<i64: 104, 128>}]} {
    %c0 = arith.constant 0 : index
    %c0_0 = arith.constant 0 : index
    %0 = vector.load %arg1[%c0, %c0_0] : memref<104x128xbf16, #tpu.memory_space<vmem>>, vector<104x128xbf16>
    %c0_1 = arith.constant 0 : index
    %c0_2 = arith.constant 0 : index
    %1 = vector.load %arg2[%c0_1, %c0_2] : memref<128x128xbf16, #tpu.memory_space<vmem>>, vector<128x128xbf16>
    %cst = arith.constant dense<0.000000e+00> : vector<104x128xf32>
    %2 = tpu.matmul %0, %1, %cst {dimension_numbers = #tpu.dot_dimension_numbers<[1], [0], [0], [1], [0, 0, 1, 1], [], []>} : vector<104x128xbf16>, vector<128x128xbf16>, vector<104x128xf32> -> vector<104x128xf32>
    %c0_3 = arith.constant 0 : index
    %c0_4 = arith.constant 0 : index
    %3 = vector.load %arg3[%c0_3, %c0_4] : memref<1x128xf32, #tpu.memory_space<vmem>>, vector<1x128xf32>
    %4 = vector.broadcast %3 : vector<1x128xf32> to vector<104x128xf32>
    %5 = arith.addf %2, %4 : vector<104x128xf32>
    %cst_5 = arith.constant 0.000000e+00 : f32
    %6 = vector.broadcast %cst_5 : f32 to vector<104x128xf32>
    %7 = arith.maximumf %5, %6 : vector<104x128xf32>
    %c0_6 = arith.constant 0 : index
    %c0_7 = arith.constant 0 : index
    %8 = vector.load %arg4[%c0_6, %c0_7] : memref<1x128xf32, #tpu.memory_space<vmem>>, vector<1x128xf32>
    %9 = vector.broadcast %8 : vector<1x128xf32> to vector<104x128xf32>
    %10 = arith.mulf %7, %9 : vector<104x128xf32>
    %c0_8 = arith.constant 0 : index
    %c0_9 = arith.constant 0 : index
    %11 = vector.load %arg5[%c0_8, %c0_9] : memref<1x128xf32, #tpu.memory_space<vmem>>, vector<1x128xf32>
    %12 = vector.broadcast %11 : vector<1x128xf32> to vector<104x128xf32>
    %13 = arith.addf %10, %12 : vector<104x128xf32>
    %c0_10 = arith.constant 0 : index
    %c0_11 = arith.constant 0 : index
    %14 = vector.load %arg6[%c0_10, %c0_11] : memref<104x128xf32, #tpu.memory_space<vmem>>, vector<104x128xf32>
    tpu.vector_store %arg6[%c0_10, %c0_11], %13 {strides = array<i32>} : memref<104x128xf32, #tpu.memory_space<vmem>>, vector<104x128xf32>,
    return
  }
  func.func @transform_0(%arg0: i32) -> (i32, i32) {
    %c0_i32 = arith.constant 0 : i32
    %c0_i32_0 = arith.constant 0 : i32
    return %arg0, %c0_i32 : i32, i32
  }
  func.func @transform_1(%arg0: i32) -> (i32, i32) {
    %c0_i32 = arith.constant 0 : i32
    %c0_i32_0 = arith.constant 0 : i32
    %c0_i32_1 = arith.constant 0 : i32
    return %c0_i32, %c0_i32_0 : i32, i32
  }
  func.func @transform_2(%arg0: i32) -> (i32, i32) {
    %c0_i32 = arith.constant 0 : i32
    %c0_i32_0 = arith.constant 0 : i32
    %c0_i32_1 = arith.constant 0 : i32
    return %c0_i32, %c0_i32_0 : i32, i32
  }
  func.func @transform_3(%arg0: i32) -> (i32, i32) {
    %c0_i32 = arith.constant 0 : i32
    %c0_i32_0 = arith.constant 0 : i32
    %c0_i32_1 = arith.constant 0 : i32
    return %c0_i32, %c0_i32_0 : i32, i32
  }
  func.func @transform_4(%arg0: i32) -> (i32, i32) {
    %c0_i32 = arith.constant 0 : i32
    %c0_i32_0 = arith.constant 0 : i32
    %c0_i32_1 = arith.constant 0 : i32
    return %c0_i32, %c0_i32_0 : i32, i32
  }
  func.func @transform_5(%arg0: i32) -> (i32, i32) {
    %c0_i32 = arith.constant 0 : i32
    %c0_i32_0 = arith.constant 0 : i32
    return %arg0, %c0_i32 : i32, i32
  }
}

</mosaic_0001>

<llo_original>
// kernel: linear_batchnorm1d_forward.2
$region0: #{linear_batchnorm1d_forward.2}
  #allocation0 [shape = 'u32[]', space=smem, size = 0x4, offset = 0x4, fixed_abs, tag = 'smem constant byte address 0x4 - core index']
  #allocation1 [shape = 'u32[144,128]{1,0:T(1,128)}', space=vmem, size = 0x12000, scoped, tag = 'internal scratch']
  %s0 = inlined_call_operand.vmem [shape: bf16[208,128], index: 0, kind: input, shape index: {}]
  %s1 = inlined_call_operand.vmem [shape: bf16[128,128], index: 1, kind: input, shape index: {}]
  %s2 = inlined_call_operand.vmem [shape: f32[1,128], index: 2, kind: input, shape index: {}]
  %s3 = inlined_call_operand.vmem [shape: f32[16,128], index: 3, kind: output, shape index: {}]
  %s4 = sld [smem:[#allocation0]]
  $region53: #{linear_batchnorm1d_forward.2} parent=0
    _
  %s6 = ssub.s32 1, %s4
  %s7 = scalar_select 0, %s6, %s4
  loop: start=0, step=1, limit=4
  $region2: #{linear_batchnorm1d_forward.2} parent=0 // loop_pre_header
    _
  $region3: #{linear_batchnorm1d_forward.2} parent=0 // loop_header
    %s9 = sphi 0, %s13
    %p10 = scmp.ge.s32.totalorder %s9, 4
    %s19 = sphi 0, %s21
    %s22 = sphi 0, %s19
    %s23 = sphi 0, %s22
    %s39 = sphi 0, %s23
    %s43 = sphi 0, %s43
    %s45 = sphi 0, %s43
    %s46 = sphi 0, %s45
    %s60 = sphi 0, %s46
    %s64 = sphi 0, %s64
    %s66 = sphi 0, %s64
    %s67 = sphi 0, %s66
    %s81 = sphi 0, %s67
    %s87 = sphi 0, %s89
    %s90 = sphi 0, %s87
    %s91 = sphi 0, %s90
    %s107 = sphi 0, %s91
  $region4: #{linear_batchnorm1d_forward.2} parent=0 // loop_header_branch
    %12 = sbr.rel (%p10) target = $region8
  $region5: #{linear_batchnorm1d_forward.2} parent=0 // loop_body
    %s14 = ssub.s32 %s9, 1
    %s15 = ssub.s32 %s9, 2
    %s16 = sadd.s32 %s9, 1
    %s17 = ssub.s32 %s9, %s16
    %p18 = scmp.eq.s32.totalorder %s17, 0
    %s20 = sadd.s32 %s19, 1
    %s21 = scalar_select %p18, %s19, %s20
    %p24 = pneg %p18
    %p25 = scmp.eq.s32.totalorder %s9, 1
    %p26 = por %p24, %p25
    %p27 = scmp.ne.s32.totalorder %s19, %s22
    %p28 = scmp.eq.s32.totalorder %s9, 0
    %p29 = por %p27, %p28
    %p30 = scmp.ne.s32.totalorder %s19, %s22
    %p31 = scmp.eq.s32.totalorder %s14, 1
    %p32 = por %p30, %p31
    %p33 = scmp.ne.s32.totalorder %s22, %s23
    %p34 = scmp.eq.s32.totalorder %s14, 0
    %p35 = por %p33, %p34
    %p36 = scmp.ne.s32.totalorder %s22, %s23
    %p37 = scmp.eq.s32.totalorder %s15, 1
    %p38 = por %p36, %p37
    %p40 = scmp.ne.s32.totalorder %s23, %s39
    %p41 = scmp.eq.s32.totalorder %s15, 0
    %p42 = por %p40, %p41
    %s44 = sadd.s32 %s43, 1
    %p47 = scmp.eq.s32.totalorder %s9, 1
    %p48 = scmp.ne.s32.totalorder %s43, %s45
    %p49 = scmp.eq.s32.totalorder %s9, 0
    %p50 = por %p48, %p49
    %p51 = scmp.ne.s32.totalorder %s43, %s45
    %p52 = scmp.eq.s32.totalorder %s14, 1
    %p53 = por %p51, %p52
    %p54 = scmp.ne.s32.totalorder %s45, %s46
    %p55 = scmp.eq.s32.totalorder %s14, 0
    %p56 = por %p54, %p55
    %p57 = scmp.ne.s32.totalorder %s45, %s46
    %p58 = scmp.eq.s32.totalorder %s15, 1
    %p59 = por %p57, %p58
    %p61 = scmp.ne.s32.totalorder %s46, %s60
    %p62 = scmp.eq.s32.totalorder %s15, 0
    %p63 = por %p61, %p62
    %s65 = sadd.s32 %s64, 1
    %p68 = scmp.eq.s32.totalorder %s9, 1
    %p69 = scmp.ne.s32.totalorder %s64, %s66
    %p70 = scmp.eq.s32.totalorder %s9, 0
    %p71 = por %p69, %p70
    %p72 = scmp.ne.s32.totalorder %s64, %s66
    %p73 = scmp.eq.s32.totalorder %s14, 1
    %p74 = por %p72, %p73
    %p75 = scmp.ne.s32.totalorder %s66, %s67
    %p76 = scmp.eq.s32.totalorder %s14, 0
    %p77 = por %p75, %p76
    %p78 = scmp.ne.s32.totalorder %s66, %s67
    %p79 = scmp.eq.s32.totalorder %s15, 1
    %p80 = por %p78, %p79
    %p82 = scmp.ne.s32.totalorder %s67, %s81
    %p83 = scmp.eq.s32.totalorder %s15, 0
    %p84 = por %p82, %p83
    %s85 = ssub.s32 %s9, %s16
    %p86 = scmp.eq.s32.totalorder %s85, 0
    %s88 = sadd.s32 %s87, 1
    %s89 = scalar_select %p86, %s87, %s88
    %p92 = pneg %p86
    %p93 = scmp.eq.s32.totalorder %s9, 1
    %p94 = por %p92, %p93
    %p95 = scmp.ne.s32.totalorder %s87, %s90
    %p96 = scmp.eq.s32.totalorder %s9, 0
    %p97 = por %p95, %p96
    %p98 = scmp.ne.s32.totalorder %s87, %s90
    %p99 = scmp.eq.s32.totalorder %s14, 1
    %p100 = por %p98, %p99
    %p101 = scmp.ne.s32.totalorder %s90, %s91
    %p102 = scmp.eq.s32.totalorder %s14, 0
    %p103 = por %p101, %p102
    %p104 = scmp.ne.s32.totalorder %s90, %s91
    %p105 = scmp.eq.s32.totalorder %s15, 1
    %p106 = por %p104, %p105
    %p108 = scmp.ne.s32.totalorder %s91, %s107
    %p109 = scmp.eq.s32.totalorder %s15, 0
    %p110 = por %p108, %p109
    %p111 = scmp.le.s32.totalorder 1, %s9
    %p112 = scmp.lt.s32.totalorder %s9, 3
    %p113 = pnand %p111, %p112
    %p114 = pneg %p113
    // Predicated region
    $region9: #{linear_batchnorm1d_forward.2} parent=5 // pred_check
      _
    $region10: #{linear_batchnorm1d_forward.2} parent=5 // pred_check_branch
      %116 = sbr.rel (%p113) target = $region12
    $region11: #{linear_batchnorm1d_forward.2} parent=5 // pred_region
      %s117 = ssub.s32 %s9, 1
      // Predicated region
      $region13: #{linear_batchnorm1d_forward.2} parent=11 // pred_check
        %p118 = pneg %p56
      $region14: #{linear_batchnorm1d_forward.2} parent=11 // pred_check_branch
        %120 = sbr.rel (%p118) target = $region16
      $region15: #{linear_batchnorm1d_forward.2} parent=11 // pred_region
        _
      $region16: #{linear_batchnorm1d_forward.2} parent=11 // pred_fallthru
        _
      // Predicated region
      $region17: #{linear_batchnorm1d_forward.2} parent=11 // pred_check
        %p121 = pneg %p77
      $region18: #{linear_batchnorm1d_forward.2} parent=11 // pred_check_branch
        %123 = sbr.rel (%p121) target = $region20
      $region19: #{linear_batchnorm1d_forward.2} parent=11 // pred_region
        _
      $region20: #{linear_batchnorm1d_forward.2} parent=11 // pred_fallthru
        _
    $region12: #{linear_batchnorm1d_forward.2} parent=5 // pred_fallthru
      _
    %p124 = scmp.lt.s32.totalorder %s9, 2
    // Predicated region
    $region21: #{linear_batchnorm1d_forward.2} parent=5 // pred_check
      %p125 = pneg %p124
    $region22: #{linear_batchnorm1d_forward.2} parent=5 // pred_check_branch
      %127 = sbr.rel (%p125) target = $region24
    $region23: #{linear_batchnorm1d_forward.2} parent=5 // pred_region
      // Predicated region
      $region25: #{linear_batchnorm1d_forward.2} parent=23 // pred_check
        %p128 = pneg %p29
      $region26: #{linear_batchnorm1d_forward.2} parent=23 // pred_check_branch
        %130 = sbr.rel (%p128) target = $region28
      $region27: #{linear_batchnorm1d_forward.2} parent=23 // pred_region
        %s131 = smul.u32 13, %s9
        %p132 = scmp.lt.s32.totalorder %s131, 25
        %s133 = scalar_select %p132, %s131, 25
        %s134 = smul.addr %s133, 4
        %s135 = scalar_lea.vmem %s0, %s134
        %s136 = smul.u32 13, %s9
      $region28: #{linear_batchnorm1d_forward.2} parent=23 // pred_fallthru
        _
    $region24: #{linear_batchnorm1d_forward.2} parent=5 // pred_fallthru
      _
    %p137 = scmp.le.s32.totalorder 1, %s9
    %p138 = scmp.lt.s32.totalorder %s9, 3
    %p139 = pnand %p137, %p138
    %p140 = pneg %p139
    // Predicated region
    $region29: #{linear_batchnorm1d_forward.2} parent=5 // pred_check
      _
    $region30: #{linear_batchnorm1d_forward.2} parent=5 // pred_check_branch
      %142 = sbr.rel (%p139) target = $region32
    $region31: #{linear_batchnorm1d_forward.2} parent=5 // pred_region
      %s143 = ssub.s32 %s9, 1
      %s144 = smul.u32 13, %s14
      %p145 = scmp.lt.s32.totalorder %s144, 25
      %s146 = scalar_select %p145, %s144, 25
      %s147 = smul.addr %s146, 4
      %s148 = scalar_lea.vmem %s0, %s147
      %p149 = pneg %p35
      %p150 = pneg %p32
      %p151 = pneg %p56
      %p152 = pneg %p53
      %p153 = pneg %p77
      %p154 = pneg %p74
      %p155 = pneg %p103
      %p156 = pneg %p100
      %p157 = scmp.lt.s32.totalorder %s14, 1
      %s158 = scalar_select %p157, %s14, 1
      %s159 = smul.addr %s158, 8
      %s160 = scalar_lea.vmem %s3, %s159
      %s161 = smul.u32 13, %s14
      %p162 = scmp.lt.s32.totalorder %s161, 25
      %s163 = scalar_select %p162, %s161, 25
      %s164 = smul.addr %s163, 4
      %s165 = scalar_lea.vmem %s0, %s164
      %s166 = smul.u32 13, %s14
      %p167 = scmp.lt.s32.totalorder %s14, 1
      %s168 = scalar_select %p167, %s14, 1
      %s169 = smul.addr %s168, 8
      %s170 = scalar_lea.vmem %s3, %s169
      %v172 = vld [vmem:[%s165] sm:$0xf]
      %v173 = vld [vmem:[%s165 + $0x4] sm:$0xf]
      %v174 = vld [vmem:[%s165 + $0x8] sm:$0xf]
      %v175 = vld [vmem:[%s165 + $0xc] sm:$0xf]
      %v176 = vld [vmem:[%s165 + $0x10] sm:$0xf]
      %v177 = vld [vmem:[%s165 + $0x14] sm:$0xf]
      %v178 = vld [vmem:[%s165 + $0x18] sm:$0xf]
      %v179 = vld [vmem:[%s165 + $0x1c] sm:$0xf]
      %v180 = vld [vmem:[%s165 + $0x20] sm:$0xf]
      %v181 = vld [vmem:[%s165 + $0x24] sm:$0xf]
      %v182 = vld [vmem:[%s165 + $0x28] sm:$0xf]
      %v183 = vld [vmem:[%s165 + $0x2c] sm:$0xf]
      %v184 = vld [vmem:[%s165 + $0x30] sm:$0xf]
      %v185 = vld [vmem:[%s1] sm:$0xf]
      %v186 = vld [vmem:[%s1 + $0x4] sm:$0xf]
      %v187 = vld [vmem:[%s1 + $0x8] sm:$0xf]
      %v188 = vld [vmem:[%s1 + $0xc] sm:$0xf]
      %v189 = vld [vmem:[%s1 + $0x10] sm:$0xf]
      %v190 = vld [vmem:[%s1 + $0x14] sm:$0xf]
      %v191 = vld [vmem:[%s1 + $0x18] sm:$0xf]
      %v192 = vld [vmem:[%s1 + $0x1c] sm:$0xf]
      %v193 = vld [vmem:[%s1 + $0x20] sm:$0xf]
      %v194 = vld [vmem:[%s1 + $0x24] sm:$0xf]
      %v195 = vld [vmem:[%s1 + $0x28] sm:$0xf]
      %v196 = vld [vmem:[%s1 + $0x2c] sm:$0xf]
      %v197 = vld [vmem:[%s1 + $0x30] sm:$0xf]
      %v198 = vld [vmem:[%s1 + $0x34] sm:$0xf]
      %v199 = vld [vmem:[%s1 + $0x38] sm:$0xf]
      %v200 = vld [vmem:[%s1 + $0x3c] sm:$0xf]
      %v201 = vld [vmem:[%s2] sm:$0x1]
      %v203 = vlaneseq
      %v204 = vshrl.u32 %v203, 7
      %v205 = vsub.s32 0, %v204
      %v206 = vrot.slane %v201, %v205
      %v221 = vunpack.c.l.b16 %v172
      %v222 = vunpack.c.l.b16 %v173
      %v223 = vunpack.c.l.b16 %v174
      %v224 = vunpack.c.l.b16 %v175
      %v225 = vunpack.c.l.b16 %v176
      %v226 = vunpack.c.l.b16 %v177
      %v227 = vunpack.c.l.b16 %v178
      %v228 = vunpack.c.l.b16 %v179
      %v229 = vunpack.c.l.b16 %v180
      %v230 = vunpack.c.l.b16 %v181
      %v231 = vunpack.c.l.b16 %v182
      %v232 = vunpack.c.l.b16 %v183
      %v233 = vunpack.c.l.b16 %v184
      %v234 = vpack.c.b16 %v222, %v221
      %v235 = vpack.c.b16 %v224, %v223
      %v236 = vpack.c.b16 %v226, %v225
      %v237 = vpack.c.b16 %v228, %v227
      %v238 = vpack.c.b16 %v230, %v229
      %v239 = vpack.c.b16 %v232, %v231
      %v240 = vpack.c.b16 %v233, %v233
      %v264 = vunpack.c.l.b16 %v185
      %v265 = vunpack.c.l.b16 %v186
      %v266 = vunpack.c.l.b16 %v187
      %v267 = vunpack.c.l.b16 %v188
      %v268 = vunpack.c.l.b16 %v189
      %v269 = vunpack.c.l.b16 %v190
      %v270 = vunpack.c.l.b16 %v191
      %v271 = vunpack.c.l.b16 %v192
      %v272 = vunpack.c.l.b16 %v193
      %v273 = vunpack.c.l.b16 %v194
      %v274 = vunpack.c.l.b16 %v195
      %v275 = vunpack.c.l.b16 %v196
      %v276 = vunpack.c.l.b16 %v197
      %v277 = vunpack.c.l.b16 %v198
      %v278 = vunpack.c.l.b16 %v199
      %v279 = vunpack.c.l.b16 %v200
      %v280 = vpack.c.b16 %v265, %v264
      %v281 = vpack.c.b16 %v267, %v266
      %v282 = vpack.c.b16 %v269, %v268
      %v283 = vpack.c.b16 %v271, %v270
      %v284 = vpack.c.b16 %v273, %v272
      %v285 = vpack.c.b16 %v275, %v274
      %v286 = vpack.c.b16 %v277, %v276
      %v287 = vpack.c.b16 %v279, %v278
      %296 = vmatprep.subr.bf16.mxu0 0
      %297 = vmatpush1.bf16.msra.mxu0 %v280
      %298 = vmatprep.subr.bf16.mxu0 0
      %299 = vmatpush1.bf16.msra.mxu0 %v281
      %300 = vmatprep.subr.bf16.mxu0 0
      %301 = vmatpush1.bf16.msra.mxu0 %v282
      %302 = vmatprep.subr.bf16.mxu0 0
      %303 = vmatpush1.bf16.msra.mxu0 %v283
      %304 = vmatprep.subr.bf16.mxu0 0
      %305 = vmatpush1.bf16.msra.mxu0 %v284
      %306 = vmatprep.subr.bf16.mxu0 0
      %307 = vmatpush1.bf16.msra.mxu0 %v285
      %308 = vmatprep.subr.bf16.mxu0 0
      %309 = vmatpush1.bf16.msra.mxu0 %v286
      %310 = vmatprep.subr.bf16.mxu0 0
      %311 = vmatpush1.bf16.msra.mxu0 %v287
      %312 = vmatprep.subr.bf16.mxu0 0
      %313 = vmatpush1.bf16.msra.mxu0 0
      %314 = vmatprep.subr.bf16.mxu0 0
      %315 = vmatpush1.bf16.msra.mxu0 0
      %316 = vmatprep.subr.bf16.mxu0 0
      %317 = vmatpush1.bf16.msra.mxu0 0
      %318 = vmatprep.subr.bf16.mxu0 0
      %319 = vmatpush1.bf16.msra.mxu0 0
      %320 = vmatprep.subr.bf16.mxu0 0
      %321 = vmatpush1.bf16.msra.mxu0 0
      %322 = vmatprep.subr.bf16.mxu0 0
      %323 = vmatpush1.bf16.msra.mxu0 0
      %324 = vmatprep.subr.bf16.mxu0 0
      %325 = vmatpush1.bf16.msra.mxu0 0
      %326 = vmatprep.subr.bf16.mxu0 0
      %327 = vmatpush1.bf16.msra.mxu0 0
      %328 = vmatprep.mubr.bf16.mxu0 0
      %329 = vmatmul.mubr.bf16.gmra.mrb[0].mxu0 %v234
      %v330 = vpop.f32.mrb[0].mxu0
      %v331 = vadd.f32 %v206, %v330
      %v332 = vpop.f32.mrb[0].mxu0
      %v333 = vpop.f32.mrb[0].mxu0
      %v334 = vadd.f32 %v206, %v333
      %v335 = vpop.f32.mrb[0].mxu0
      %336 = vmatprep.mubr.bf16.mxu0 0
      %337 = vmatmul.mubr.bf16.gmra.mrb[0].mxu0 %v235
      %v338 = vpop.f32.mrb[0].mxu0
      %v339 = vadd.f32 %v206, %v338
      %v340 = vpop.f32.mrb[0].mxu0
      %v341 = vpop.f32.mrb[0].mxu0
      %v342 = vadd.f32 %v206, %v341
      %v343 = vpop.f32.mrb[0].mxu0
      %344 = vmatprep.mubr.bf16.mxu0 0
      %345 = vmatmul.mubr.bf16.gmra.mrb[0].mxu0 %v236
      %v346 = vpop.f32.mrb[0].mxu0
      %v347 = vadd.f32 %v206, %v346
      %v348 = vpop.f32.mrb[0].mxu0
      %v349 = vpop.f32.mrb[0].mxu0
      %v350 = vadd.f32 %v206, %v349
      %v351 = vpop.f32.mrb[0].mxu0
      %352 = vmatprep.mubr.bf16.mxu0 0
      %353 = vmatmul.mubr.bf16.gmra.mrb[0].mxu0 %v237
      %v354 = vpop.f32.mrb[0].mxu0
      %v355 = vadd.f32 %v206, %v354
      %v356 = vpop.f32.mrb[0].mxu0
      %v357 = vpop.f32.mrb[0].mxu0
      %v358 = vadd.f32 %v206, %v357
      %v359 = vpop.f32.mrb[0].mxu0
      %360 = vmatprep.mubr.bf16.mxu0 0
      %361 = vmatmul.mubr.bf16.gmra.mrb[0].mxu0 %v238
      %v362 = vpop.f32.mrb[0].mxu0
      %v363 = vadd.f32 %v206, %v362
      %v364 = vpop.f32.mrb[0].mxu0
      %v365 = vpop.f32.mrb[0].mxu0
      %v366 = vadd.f32 %v206, %v365
      %v367 = vpop.f32.mrb[0].mxu0
      %368 = vmatprep.mubr.bf16.mxu0 0
      %369 = vmatmul.mubr.bf16.gmra.mrb[0].mxu0 %v239
      %v370 = vpop.f32.mrb[0].mxu0
      %v371 = vadd.f32 %v206, %v370
      %v372 = vpop.f32.mrb[0].mxu0
      %v373 = vpop.f32.mrb[0].mxu0
      %v374 = vadd.f32 %v206, %v373
      %v375 = vpop.f32.mrb[0].mxu0
      %376 = vmatprep.mubr.bf16.mxu0 0
      %377 = vmatmul.mubr.bf16.gmra.mrb[0].mxu0 %v240
      %v378 = vpop.f32.mrb[0].mxu0
      %v379 = vadd.f32 %v206, %v378
      %v380 = vpop.f32.mrb[0].mxu0
      %v381 = vpop.f32.mrb[0].mxu0
      %v382 = vpop.f32.mrb[0].mxu0
      %383 = vdwg.mxu0
      %v384 = vmax.f32 %v331, 0.0
      %v385 = vmax.f32 %v334, 0.0
      %v386 = vmax.f32 %v339, 0.0
      %v387 = vmax.f32 %v342, 0.0
      %v388 = vmax.f32 %v347, 0.0
      %v389 = vmax.f32 %v350, 0.0
      %v390 = vmax.f32 %v355, 0.0
      %v391 = vmax.f32 %v358, 0.0
      %v392 = vmax.f32 %v363, 0.0
      %v393 = vmax.f32 %v366, 0.0
      %v394 = vmax.f32 %v371, 0.0
      %v395 = vmax.f32 %v374, 0.0
      %v396 = vmax.f32 %v379, 0.0
      %v397 = vlaneseq
      %v398 = vshrl.u32 %v397, 7
      %p399 = scmp.lt.s32.totalorder %s14, 1
      // Predicated region
      $region33: #{linear_batchnorm1d_forward.2} parent=31 // pred_check
        %p400 = pneg %p399
      $region34: #{linear_batchnorm1d_forward.2} parent=31 // pred_check_branch
        %402 = sbr.rel (%p400) target = $region36
      $region35: #{linear_batchnorm1d_forward.2} parent=31 // pred_region
        %v403 = vadd.f32 %v384, %v385
        %v404 = vadd.f32 %v403, %v386
        %v405 = vadd.f32 %v404, %v387
        %v406 = vadd.f32 %v405, %v388
        %v407 = vadd.f32 %v406, %v389
        %v408 = vadd.f32 %v407, %v390
        %v409 = vadd.f32 %v408, %v391
        %v410 = vadd.f32 %v409, %v392
        %v411 = vadd.f32 %v410, %v393
        %v412 = vadd.f32 %v411, %v394
        %v413 = vadd.f32 %v412, %v395
        %v414 = vadd.f32 %v413, %v396
        %v415 = vrot.slane %v414, 4
        %v416 = vadd.f32 %v414, %v415
        %v417 = vrot.slane %v416, 2
        %v418 = vadd.f32 %v416, %v417
        %v419 = vrot.slane %v418, 1
        %v420 = vadd.f32 %v418, %v419
        %v421 = vmul.f32 %v384, %v384
        %v422 = vmul.f32 %v385, %v385
        %v423 = vmul.f32 %v386, %v386
        %v424 = vmul.f32 %v387, %v387
        %v425 = vmul.f32 %v388, %v388
        %v426 = vmul.f32 %v389, %v389
        %v427 = vmul.f32 %v390, %v390
        %v428 = vmul.f32 %v391, %v391
        %v429 = vmul.f32 %v392, %v392
        %v430 = vmul.f32 %v393, %v393
        %v431 = vmul.f32 %v394, %v394
        %v432 = vmul.f32 %v395, %v395
        %v433 = vmul.f32 %v396, %v396
        %v434 = vadd.f32 %v421, %v422
        %v435 = vadd.f32 %v434, %v423
        %v436 = vadd.f32 %v435, %v424
        %v437 = vadd.f32 %v436, %v425
        %v438 = vadd.f32 %v437, %v426
        %v439 = vadd.f32 %v438, %v427
        %v440 = vadd.f32 %v439, %v428
        %v441 = vadd.f32 %v440, %v429
        %v442 = vadd.f32 %v441, %v430
        %v443 = vadd.f32 %v442, %v431
        %v444 = vadd.f32 %v443, %v432
        %v445 = vadd.f32 %v444, %v433
        %v446 = vrot.slane %v445, 4
        %v447 = vadd.f32 %v445, %v446
        %v448 = vrot.slane %v447, 2
        %v449 = vadd.f32 %v447, %v448
        %v450 = vrot.slane %v449, 1
        %v451 = vadd.f32 %v449, %v450
        %vm452 = vcmp.eq.s32.totalorder %v398, 0
        %v453 = vsel %vm452, %v420, %v451
        %454 = vst [vmem:[%s170] sm:$0xff] %v453
      $region36: #{linear_batchnorm1d_forward.2} parent=31 // pred_fallthru
        _
      %p455 = scmp.eq.s32.totalorder %s14, 1
      // Predicated region
      $region37: #{linear_batchnorm1d_forward.2} parent=31 // pred_check
        %p456 = pneg %p455
      $region38: #{linear_batchnorm1d_forward.2} parent=31 // pred_check_branch
        %458 = sbr.rel (%p456) target = $region40
      $region39: #{linear_batchnorm1d_forward.2} parent=31 // pred_region
        %s459 = smul.u32 %s14, 104
        %v460 = vadd.s32 %v398, 8
        %v461 = vadd.s32 %v398, 16
        %v462 = vadd.s32 %v398, 24
        %v463 = vadd.s32 %v398, 32
        %v464 = vadd.s32 %v398, 40
        %v465 = vadd.s32 %v398, 48
        %v466 = vadd.s32 %v398, 56
        %v467 = vadd.s32 %v398, 64
        %v468 = vadd.s32 %v398, 72
        %v469 = vadd.s32 %v398, 80
        %v470 = vadd.s32 %v398, 88
        %v471 = vadd.s32 %v398, 96
        %v472 = vstv %s459
        %v473 = vadd.s32 %v472, %v398
        %v474 = vadd.s32 %v472, %v460
        %v475 = vadd.s32 %v472, %v461
        %v476 = vadd.s32 %v472, %v462
        %v477 = vadd.s32 %v472, %v463
        %v478 = vadd.s32 %v472, %v464
        %v479 = vadd.s32 %v472, %v465
        %v480 = vadd.s32 %v472, %v466
        %v481 = vadd.s32 %v472, %v467
        %v482 = vadd.s32 %v472, %v468
        %v483 = vadd.s32 %v472, %v469
        %v484 = vadd.s32 %v472, %v470
        %v485 = vadd.s32 %v472, %v471
        %vm486 = vcmp.lt.s32.totalorder %v473, 200
        %vm487 = vcmp.lt.s32.totalorder %v474, 200
        %vm488 = vcmp.lt.s32.totalorder %v475, 200
        %vm489 = vcmp.lt.s32.totalorder %v476, 200
        %vm490 = vcmp.lt.s32.totalorder %v477, 200
        %vm491 = vcmp.lt.s32.totalorder %v478, 200
        %vm492 = vcmp.lt.s32.totalorder %v479, 200
        %vm493 = vcmp.lt.s32.totalorder %v480, 200
        %vm494 = vcmp.lt.s32.totalorder %v481, 200
        %vm495 = vcmp.lt.s32.totalorder %v482, 200
        %vm496 = vcmp.lt.s32.totalorder %v483, 200
        %vm497 = vcmp.lt.s32.totalorder %v484, 200
        %vm498 = vcmp.lt.s32.totalorder %v485, 200
        %v499 = vsel %vm486, %v384, 0.0
        %v500 = vsel %vm487, %v385, 0.0
        %v501 = vsel %vm488, %v386, 0.0
        %v502 = vsel %vm489, %v387, 0.0
        %v503 = vsel %vm490, %v388, 0.0
        %v504 = vsel %vm491, %v389, 0.0
        %v505 = vsel %vm492, %v390, 0.0
        %v506 = vsel %vm493, %v391, 0.0
        %v507 = vsel %vm494, %v392, 0.0
        %v508 = vsel %vm495, %v393, 0.0
        %v509 = vsel %vm496, %v394, 0.0
        %v510 = vsel %vm497, %v395, 0.0
        %v511 = vsel %vm498, %v396, 0.0
        %v512 = vadd.f32 %v499, %v500
        %v513 = vadd.f32 %v512, %v501
        %v514 = vadd.f32 %v513, %v502
        %v515 = vadd.f32 %v514, %v503
        %v516 = vadd.f32 %v515, %v504
        %v517 = vadd.f32 %v516, %v505
        %v518 = vadd.f32 %v517, %v506
        %v519 = vadd.f32 %v518, %v507
        %v520 = vadd.f32 %v519, %v508
        %v521 = vadd.f32 %v520, %v509
        %v522 = vadd.f32 %v521, %v510
        %v523 = vadd.f32 %v522, %v511
        %v524 = vrot.slane %v523, 4
        %v525 = vadd.f32 %v523, %v524
        %v526 = vrot.slane %v525, 2
        %v527 = vadd.f32 %v525, %v526
        %v528 = vrot.slane %v527, 1
        %v529 = vadd.f32 %v527, %v528
        %v530 = vmul.f32 %v499, %v499
        %v531 = vmul.f32 %v500, %v500
        %v532 = vmul.f32 %v501, %v501
        %v533 = vmul.f32 %v502, %v502
        %v534 = vmul.f32 %v503, %v503
        %v535 = vmul.f32 %v504, %v504
        %v536 = vmul.f32 %v505, %v505
        %v537 = vmul.f32 %v506, %v506
        %v538 = vmul.f32 %v507, %v507
        %v539 = vmul.f32 %v508, %v508
        %v540 = vmul.f32 %v509, %v509
        %v541 = vmul.f32 %v510, %v510
        %v542 = vmul.f32 %v511, %v511
        %v543 = vadd.f32 %v530, %v531
        %v544 = vadd.f32 %v543, %v532
        %v545 = vadd.f32 %v544, %v533
        %v546 = vadd.f32 %v545, %v534
        %v547 = vadd.f32 %v546, %v535
        %v548 = vadd.f32 %v547, %v536
        %v549 = vadd.f32 %v548, %v537
        %v550 = vadd.f32 %v549, %v538
        %v551 = vadd.f32 %v550, %v539
        %v552 = vadd.f32 %v551, %v540
        %v553 = vadd.f32 %v552, %v541
        %v554 = vadd.f32 %v553, %v542
        %v555 = vrot.slane %v554, 4
        %v556 = vadd.f32 %v554, %v555
        %v557 = vrot.slane %v556, 2
        %v558 = vadd.f32 %v556, %v557
        %v559 = vrot.slane %v558, 1
        %v560 = vadd.f32 %v558, %v559
        %vm561 = vcmp.eq.s32.totalorder %v398, 0
        %v562 = vsel %vm561, %v529, %v560
        %563 = vst [vmem:[%s170] sm:$0xff] %v562
      $region40: #{linear_batchnorm1d_forward.2} parent=31 // pred_fallthru
        _
      %p564 = scmp.lt.s32.totalorder %s14, 1
      %s565 = scalar_select %p564, %s14, 1
      %s566 = smul.addr %s565, 8
      %s567 = scalar_lea.vmem %s3, %s566
      // Predicated region
      $region41: #{linear_batchnorm1d_forward.2} parent=31 // pred_check
        %p568 = pneg %p100
      $region42: #{linear_batchnorm1d_forward.2} parent=31 // pred_check_branch
        %570 = sbr.rel (%p568) target = $region44
      $region43: #{linear_batchnorm1d_forward.2} parent=31 // pred_region
        _
      $region44: #{linear_batchnorm1d_forward.2} parent=31 // pred_fallthru
        _
    $region32: #{linear_batchnorm1d_forward.2} parent=5 // pred_fallthru
      _
    %p571 = scmp.le.s32.totalorder 2, %s9
    // Predicated region
    $region45: #{linear_batchnorm1d_forward.2} parent=5 // pred_check
      %p572 = pneg %p571
    $region46: #{linear_batchnorm1d_forward.2} parent=5 // pred_check_branch
      %574 = sbr.rel (%p572) target = $region48
    $region47: #{linear_batchnorm1d_forward.2} parent=5 // pred_region
      %s575 = ssub.s32 %s9, 2
      // Predicated region
      $region49: #{linear_batchnorm1d_forward.2} parent=47 // pred_check
        %p576 = pneg %p106
      $region50: #{linear_batchnorm1d_forward.2} parent=47 // pred_check_branch
        %578 = sbr.rel (%p576) target = $region52
      $region51: #{linear_batchnorm1d_forward.2} parent=47 // pred_region
        %p579 = scmp.lt.s32.totalorder %s15, 1
        %s580 = scalar_select %p579, %s15, 1
        %s581 = smul.addr %s580, 8
        %s582 = scalar_lea.vmem %s3, %s581
      $region52: #{linear_batchnorm1d_forward.2} parent=47 // pred_fallthru
        _
    $region48: #{linear_batchnorm1d_forward.2} parent=5 // pred_fallthru
      _
  $region6: #{linear_batchnorm1d_forward.2} parent=0 // loop_footer
    %s13 = sadd.s32 1, %s9
  $region7: #{linear_batchnorm1d_forward.2} parent=0 // loop_footer_branch
    %8 = sbr.rel target = $region3
  $region8: #{linear_batchnorm1d_forward.2} parent=0 // loop_exit
    _

// kernel: linear_batchnorm1d_forward.3
$region0: #{linear_batchnorm1d_forward.3}
  #allocation0 [shape = 'u32[]', space=smem, size = 0x4, offset = 0x4, fixed_abs, tag = 'smem constant byte address 0x4 - core index']
  #allocation1 [shape = 'u32[144,128]{1,0:T(1,128)}', space=vmem, size = 0x12000, scoped, tag = 'internal scratch']
  %s0 = inlined_call_operand.vmem [shape: bf16[208,128], index: 0, kind: input, shape index: {}]
  %s1 = inlined_call_operand.vmem [shape: bf16[128,128], index: 1, kind: input, shape index: {}]
  %s2 = inlined_call_operand.vmem [shape: f32[1,128], index: 2, kind: input, shape index: {}]
  %s3 = inlined_call_operand.vmem [shape: f32[1,128], index: 3, kind: input, shape index: {}]
  %s4 = inlined_call_operand.vmem [shape: f32[1,128], index: 4, kind: input, shape index: {}]
  %s5 = inlined_call_operand.vmem [shape: f32[208,128], index: 5, kind: output, shape index: {}]
  %s6 = sld [smem:[#allocation0]]
  $region53: #{linear_batchnorm1d_forward.3} parent=0
    _
  %s8 = ssub.s32 1, %s6
  %s9 = scalar_select 0, %s8, %s6
  loop: start=0, step=1, limit=4
  $region2: #{linear_batchnorm1d_forward.3} parent=0 // loop_pre_header
    _
  $region3: #{linear_batchnorm1d_forward.3} parent=0 // loop_header
    %s11 = sphi 0, %s15
    %p12 = scmp.ge.s32.totalorder %s11, 4
    %s21 = sphi 0, %s23
    %s24 = sphi 0, %s21
    %s25 = sphi 0, %s24
    %s41 = sphi 0, %s25
    %s45 = sphi 0, %s45
    %s47 = sphi 0, %s45
    %s48 = sphi 0, %s47
    %s62 = sphi 0, %s48
    %s66 = sphi 0, %s66
    %s68 = sphi 0, %s66
    %s69 = sphi 0, %s68
    %s83 = sphi 0, %s69
    %s87 = sphi 0, %s87
    %s89 = sphi 0, %s87
    %s90 = sphi 0, %s89
    %s104 = sphi 0, %s90
    %s108 = sphi 0, %s108
    %s110 = sphi 0, %s108
    %s111 = sphi 0, %s110
    %s125 = sphi 0, %s111
    %s131 = sphi 0, %s133
    %s134 = sphi 0, %s131
    %s135 = sphi 0, %s134
    %s151 = sphi 0, %s135
  $region4: #{linear_batchnorm1d_forward.3} parent=0 // loop_header_branch
    %14 = sbr.rel (%p12) target = $region8
  $region5: #{linear_batchnorm1d_forward.3} parent=0 // loop_body
    %s16 = ssub.s32 %s11, 1
    %s17 = ssub.s32 %s11, 2
    %s18 = sadd.s32 %s11, 1
    %s19 = ssub.s32 %s11, %s18
    %p20 = scmp.eq.s32.totalorder %s19, 0
    %s22 = sadd.s32 %s21, 1
    %s23 = scalar_select %p20, %s21, %s22
    %p26 = pneg %p20
    %p27 = scmp.eq.s32.totalorder %s11, 1
    %p28 = por %p26, %p27
    %p29 = scmp.ne.s32.totalorder %s21, %s24
    %p30 = scmp.eq.s32.totalorder %s11, 0
    %p31 = por %p29, %p30
    %p32 = scmp.ne.s32.totalorder %s21, %s24
    %p33 = scmp.eq.s32.totalorder %s16, 1
    %p34 = por %p32, %p33
    %p35 = scmp.ne.s32.totalorder %s24, %s25
    %p36 = scmp.eq.s32.totalorder %s16, 0
    %p37 = por %p35, %p36
    %p38 = scmp.ne.s32.totalorder %s24, %s25
    %p39 = scmp.eq.s32.totalorder %s17, 1
    %p40 = por %p38, %p39
    %p42 = scmp.ne.s32.totalorder %s25, %s41
    %p43 = scmp.eq.s32.totalorder %s17, 0
    %p44 = por %p42, %p43
    %s46 = sadd.s32 %s45, 1
    %p49 = scmp.eq.s32.totalorder %s11, 1
    %p50 = scmp.ne.s32.totalorder %s45, %s47
    %p51 = scmp.eq.s32.totalorder %s11, 0
    %p52 = por %p50, %p51
    %p53 = scmp.ne.s32.totalorder %s45, %s47
    %p54 = scmp.eq.s32.totalorder %s16, 1
    %p55 = por %p53, %p54
    %p56 = scmp.ne.s32.totalorder %s47, %s48
    %p57 = scmp.eq.s32.totalorder %s16, 0
    %p58 = por %p56, %p57
    %p59 = scmp.ne.s32.totalorder %s47, %s48
    %p60 = scmp.eq.s32.totalorder %s17, 1
    %p61 = por %p59, %p60
    %p63 = scmp.ne.s32.totalorder %s48, %s62
    %p64 = scmp.eq.s32.totalorder %s17, 0
    %p65 = por %p63, %p64
    %s67 = sadd.s32 %s66, 1
    %p70 = scmp.eq.s32.totalorder %s11, 1
    %p71 = scmp.ne.s32.totalorder %s66, %s68
    %p72 = scmp.eq.s32.totalorder %s11, 0
    %p73 = por %p71, %p72
    %p74 = scmp.ne.s32.totalorder %s66, %s68
    %p75 = scmp.eq.s32.totalorder %s16, 1
    %p76 = por %p74, %p75
    %p77 = scmp.ne.s32.totalorder %s68, %s69
    %p78 = scmp.eq.s32.totalorder %s16, 0
    %p79 = por %p77, %p78
    %p80 = scmp.ne.s32.totalorder %s68, %s69
    %p81 = scmp.eq.s32.totalorder %s17, 1
    %p82 = por %p80, %p81
    %p84 = scmp.ne.s32.totalorder %s69, %s83
    %p85 = scmp.eq.s32.totalorder %s17, 0
    %p86 = por %p84, %p85
    %s88 = sadd.s32 %s87, 1
    %p91 = scmp.eq.s32.totalorder %s11, 1
    %p92 = scmp.ne.s32.totalorder %s87, %s89
    %p93 = scmp.eq.s32.totalorder %s11, 0
    %p94 = por %p92, %p93
    %p95 = scmp.ne.s32.totalorder %s87, %s89
    %p96 = scmp.eq.s32.totalorder %s16, 1
    %p97 = por %p95, %p96
    %p98 = scmp.ne.s32.totalorder %s89, %s90
    %p99 = scmp.eq.s32.totalorder %s16, 0
    %p100 = por %p98, %p99
    %p101 = scmp.ne.s32.totalorder %s89, %s90
    %p102 = scmp.eq.s32.totalorder %s17, 1
    %p103 = por %p101, %p102
    %p105 = scmp.ne.s32.totalorder %s90, %s104
    %p106 = scmp.eq.s32.totalorder %s17, 0
    %p107 = por %p105, %p106
    %s109 = sadd.s32 %s108, 1
    %p112 = scmp.eq.s32.totalorder %s11, 1
    %p113 = scmp.ne.s32.totalorder %s108, %s110
    %p114 = scmp.eq.s32.totalorder %s11, 0
    %p115 = por %p113, %p114
    %p116 = scmp.ne.s32.totalorder %s108, %s110
    %p117 = scmp.eq.s32.totalorder %s16, 1
    %p118 = por %p116, %p117
    %p119 = scmp.ne.s32.totalorder %s110, %s111
    %p120 = scmp.eq.s32.totalorder %s16, 0
    %p121 = por %p119, %p120
    %p122 = scmp.ne.s32.totalorder %s110, %s111
    %p123 = scmp.eq.s32.totalorder %s17, 1
    %p124 = por %p122, %p123
    %p126 = scmp.ne.s32.totalorder %s111, %s125
    %p127 = scmp.eq.s32.totalorder %s17, 0
    %p128 = por %p126, %p127
    %s129 = ssub.s32 %s11, %s18
    %p130 = scmp.eq.s32.totalorder %s129, 0
    %s132 = sadd.s32 %s131, 1
    %s133 = scalar_select %p130, %s131, %s132
    %p136 = pneg %p130
    %p137 = scmp.eq.s32.totalorder %s11, 1
    %p138 = por %p136, %p137
    %p139 = scmp.ne.s32.totalorder %s131, %s134
    %p140 = scmp.eq.s32.totalorder %s11, 0
    %p141 = por %p139, %p140
    %p142 = scmp.ne.s32.totalorder %s131, %s134
    %p143 = scmp.eq.s32.totalorder %s16, 1
    %p144 = por %p142, %p143
    %p145 = scmp.ne.s32.totalorder %s134, %s135
    %p146 = scmp.eq.s32.totalorder %s16, 0
    %p147 = por %p145, %p146
    %p148 = scmp.ne.s32.totalorder %s134, %s135
    %p149 = scmp.eq.s32.totalorder %s17, 1
    %p150 = por %p148, %p149
    %p152 = scmp.ne.s32.totalorder %s135, %s151
    %p153 = scmp.eq.s32.totalorder %s17, 0
    %p154 = por %p152, %p153
    %p155 = scmp.le.s32.totalorder 1, %s11
    %p156 = scmp.lt.s32.totalorder %s11, 3
    %p157 = pnand %p155, %p156
    %p158 = pneg %p157
    // Predicated region
    $region9: #{linear_batchnorm1d_forward.3} parent=5 // pred_check
      _
    $region10: #{linear_batchnorm1d_forward.3} parent=5 // pred_check_branch
      %160 = sbr.rel (%p157) target = $region12
    $region11: #{linear_batchnorm1d_forward.3} parent=5 // pred_region
      %s161 = ssub.s32 %s11, 1
      // Predicated region
      $region13: #{linear_batchnorm1d_forward.3} parent=11 // pred_check
        %p162 = pneg %p58
      $region14: #{linear_batchnorm1d_forward.3} parent=11 // pred_check_branch
        %164 = sbr.rel (%p162) target = $region16
      $region15: #{linear_batchnorm1d_forward.3} parent=11 // pred_region
        _
      $region16: #{linear_batchnorm1d_forward.3} parent=11 // pred_fallthru
        _
      // Predicated region
      $region17: #{linear_batchnorm1d_forward.3} parent=11 // pred_check
        %p165 = pneg %p79
      $region18: #{linear_batchnorm1d_forward.3} parent=11 // pred_check_branch
        %167 = sbr.rel (%p165) target = $region20
      $region19: #{linear_batchnorm1d_forward.3} parent=11 // pred_region
        _
      $region20: #{linear_batchnorm1d_forward.3} parent=11 // pred_fallthru
        _
      // Predicated region
      $region21: #{linear_batchnorm1d_forward.3} parent=11 // pred_check
        %p168 = pneg %p100
      $region22: #{linear_batchnorm1d_forward.3} parent=11 // pred_check_branch
        %170 = sbr.rel (%p168) target = $region24
      $region23: #{linear_batchnorm1d_forward.3} parent=11 // pred_region
        _
      $region24: #{linear_batchnorm1d_forward.3} parent=11 // pred_fallthru
        _
      // Predicated region
      $region25: #{linear_batchnorm1d_forward.3} parent=11 // pred_check
        %p171 = pneg %p121
      $region26: #{linear_batchnorm1d_forward.3} parent=11 // pred_check_branch
        %173 = sbr.rel (%p171) target = $region28
      $region27: #{linear_batchnorm1d_forward.3} parent=11 // pred_region
        _
      $region28: #{linear_batchnorm1d_forward.3} parent=11 // pred_fallthru
        _
    $region12: #{linear_batchnorm1d_forward.3} parent=5 // pred_fallthru
      _
    %p174 = scmp.lt.s32.totalorder %s11, 2
    // Predicated region
    $region29: #{linear_batchnorm1d_forward.3} parent=5 // pred_check
      %p175 = pneg %p174
    $region30: #{linear_batchnorm1d_forward.3} parent=5 // pred_check_branch
      %177 = sbr.rel (%p175) target = $region32
    $region31: #{linear_batchnorm1d_forward.3} parent=5 // pred_region
      // Predicated region
      $region33: #{linear_batchnorm1d_forward.3} parent=31 // pred_check
        %p178 = pneg %p31
      $region34: #{linear_batchnorm1d_forward.3} parent=31 // pred_check_branch
        %180 = sbr.rel (%p178) target = $region36
      $region35: #{linear_batchnorm1d_forward.3} parent=31 // pred_region
        %s181 = smul.u32 13, %s11
        %p182 = scmp.lt.s32.totalorder %s181, 25
        %s183 = scalar_select %p182, %s181, 25
        %s184 = smul.addr %s183, 4
        %s185 = scalar_lea.vmem %s0, %s184
        %s186 = smul.u32 13, %s11
      $region36: #{linear_batchnorm1d_forward.3} parent=31 // pred_fallthru
        _
    $region32: #{linear_batchnorm1d_forward.3} parent=5 // pred_fallthru
      _
    %p187 = scmp.le.s32.totalorder 1, %s11
    %p188 = scmp.lt.s32.totalorder %s11, 3
    %p189 = pnand %p187, %p188
    %p190 = pneg %p189
    // Predicated region
    $region37: #{linear_batchnorm1d_forward.3} parent=5 // pred_check
      _
    $region38: #{linear_batchnorm1d_forward.3} parent=5 // pred_check_branch
      %192 = sbr.rel (%p189) target = $region40
    $region39: #{linear_batchnorm1d_forward.3} parent=5 // pred_region
      %s193 = ssub.s32 %s11, 1
      %s194 = smul.u32 13, %s16
      %p195 = scmp.lt.s32.totalorder %s194, 25
      %s196 = scalar_select %p195, %s194, 25
      %s197 = smul.addr %s196, 4
      %s198 = scalar_lea.vmem %s0, %s197
      %p199 = pneg %p37
      %p200 = pneg %p34
      %p201 = pneg %p58
      %p202 = pneg %p55
      %p203 = pneg %p79
      %p204 = pneg %p76
      %p205 = pneg %p100
      %p206 = pneg %p97
      %p207 = pneg %p121
      %p208 = pneg %p118
      %p209 = pneg %p147
      %p210 = pneg %p144
      %s211 = smul.u32 13, %s16
      %p212 = scmp.lt.s32.totalorder %s211, 25
      %s213 = scalar_select %p212, %s211, 25
      %s214 = smul.addr %s213, 8
      %s215 = scalar_lea.vmem %s5, %s214
      %s216 = smul.u32 13, %s16
      %p217 = scmp.lt.s32.totalorder %s216, 25
      %s218 = scalar_select %p217, %s216, 25
      %s219 = smul.addr %s218, 4
      %s220 = scalar_lea.vmem %s0, %s219
      %s221 = smul.u32 13, %s16
      %s222 = smul.u32 13, %s16
      %p223 = scmp.lt.s32.totalorder %s222, 25
      %s224 = scalar_select %p223, %s222, 25
      %s225 = smul.addr %s224, 8
      %s226 = scalar_lea.vmem %s5, %s225
      %s227 = smul.u32 13, %s16
      %v229 = vld [vmem:[%s220] sm:$0xf]
      %v230 = vld [vmem:[%s220 + $0x4] sm:$0xf]
      %v231 = vld [vmem:[%s220 + $0x8] sm:$0xf]
      %v232 = vld [vmem:[%s220 + $0xc] sm:$0xf]
      %v233 = vld [vmem:[%s220 + $0x10] sm:$0xf]
      %v234 = vld [vmem:[%s220 + $0x14] sm:$0xf]
      %v235 = vld [vmem:[%s220 + $0x18] sm:$0xf]
      %v236 = vld [vmem:[%s220 + $0x1c] sm:$0xf]
      %v237 = vld [vmem:[%s220 + $0x20] sm:$0xf]
      %v238 = vld [vmem:[%s220 + $0x24] sm:$0xf]
      %v239 = vld [vmem:[%s220 + $0x28] sm:$0xf]
      %v240 = vld [vmem:[%s220 + $0x2c] sm:$0xf]
      %v241 = vld [vmem:[%s220 + $0x30] sm:$0xf]
      %v242 = vld [vmem:[%s1] sm:$0xf]
      %v243 = vld [vmem:[%s1 + $0x4] sm:$0xf]
      %v244 = vld [vmem:[%s1 + $0x8] sm:$0xf]
      %v245 = vld [vmem:[%s1 + $0xc] sm:$0xf]
      %v246 = vld [vmem:[%s1 + $0x10] sm:$0xf]
      %v247 = vld [vmem:[%s1 + $0x14] sm:$0xf]
      %v248 = vld [vmem:[%s1 + $0x18] sm:$0xf]
      %v249 = vld [vmem:[%s1 + $0x1c] sm:$0xf]
      %v250 = vld [vmem:[%s1 + $0x20] sm:$0xf]
      %v251 = vld [vmem:[%s1 + $0x24] sm:$0xf]
      %v252 = vld [vmem:[%s1 + $0x28] sm:$0xf]
      %v253 = vld [vmem:[%s1 + $0x2c] sm:$0xf]
      %v254 = vld [vmem:[%s1 + $0x30] sm:$0xf]
      %v255 = vld [vmem:[%s1 + $0x34] sm:$0xf]
      %v256 = vld [vmem:[%s1 + $0x38] sm:$0xf]
      %v257 = vld [vmem:[%s1 + $0x3c] sm:$0xf]
      %v258 = vld [vmem:[%s2] sm:$0x1]
      %v260 = vlaneseq
      %v261 = vshrl.u32 %v260, 7
      %v262 = vsub.s32 0, %v261
      %v263 = vrot.slane %v258, %v262
      %v278 = vunpack.c.l.b16 %v229
      %v279 = vunpack.c.l.b16 %v230
      %v280 = vunpack.c.l.b16 %v231
      %v281 = vunpack.c.l.b16 %v232
      %v282 = vunpack.c.l.b16 %v233
      %v283 = vunpack.c.l.b16 %v234
      %v284 = vunpack.c.l.b16 %v235
      %v285 = vunpack.c.l.b16 %v236
      %v286 = vunpack.c.l.b16 %v237
      %v287 = vunpack.c.l.b16 %v238
      %v288 = vunpack.c.l.b16 %v239
      %v289 = vunpack.c.l.b16 %v240
      %v290 = vunpack.c.l.b16 %v241
      %v291 = vpack.c.b16 %v279, %v278
      %v292 = vpack.c.b16 %v281, %v280
      %v293 = vpack.c.b16 %v283, %v282
      %v294 = vpack.c.b16 %v285, %v284
      %v295 = vpack.c.b16 %v287, %v286
      %v296 = vpack.c.b16 %v289, %v288
      %v297 = vpack.c.b16 %v290, %v290
      %v321 = vunpack.c.l.b16 %v242
      %v322 = vunpack.c.l.b16 %v243
      %v323 = vunpack.c.l.b16 %v244
      %v324 = vunpack.c.l.b16 %v245
      %v325 = vunpack.c.l.b16 %v246
      %v326 = vunpack.c.l.b16 %v247
      %v327 = vunpack.c.l.b16 %v248
      %v328 = vunpack.c.l.b16 %v249
      %v329 = vunpack.c.l.b16 %v250
      %v330 = vunpack.c.l.b16 %v251
      %v331 = vunpack.c.l.b16 %v252
      %v332 = vunpack.c.l.b16 %v253
      %v333 = vunpack.c.l.b16 %v254
      %v334 = vunpack.c.l.b16 %v255
      %v335 = vunpack.c.l.b16 %v256
      %v336 = vunpack.c.l.b16 %v257
      %v337 = vpack.c.b16 %v322, %v321
      %v338 = vpack.c.b16 %v324, %v323
      %v339 = vpack.c.b16 %v326, %v325
      %v340 = vpack.c.b16 %v328, %v327
      %v341 = vpack.c.b16 %v330, %v329
      %v342 = vpack.c.b16 %v332, %v331
      %v343 = vpack.c.b16 %v334, %v333
      %v344 = vpack.c.b16 %v336, %v335
      %353 = vmatprep.subr.bf16.mxu0 0
      %354 = vmatpush1.bf16.msra.mxu0 %v337
      %355 = vmatprep.subr.bf16.mxu0 0
      %356 = vmatpush1.bf16.msra.mxu0 %v338
      %357 = vmatprep.subr.bf16.mxu0 0
      %358 = vmatpush1.bf16.msra.mxu0 %v339
      %359 = vmatprep.subr.bf16.mxu0 0
      %360 = vmatpush1.bf16.msra.mxu0 %v340
      %361 = vmatprep.subr.bf16.mxu0 0
      %362 = vmatpush1.bf16.msra.mxu0 %v341
      %363 = vmatprep.subr.bf16.mxu0 0
      %364 = vmatpush1.bf16.msra.mxu0 %v342
      %365 = vmatprep.subr.bf16.mxu0 0
      %366 = vmatpush1.bf16.msra.mxu0 %v343
      %367 = vmatprep.subr.bf16.mxu0 0
      %368 = vmatpush1.bf16.msra.mxu0 %v344
      %369 = vmatprep.subr.bf16.mxu0 0
      %370 = vmatpush1.bf16.msra.mxu0 0
      %371 = vmatprep.subr.bf16.mxu0 0
      %372 = vmatpush1.bf16.msra.mxu0 0
      %373 = vmatprep.subr.bf16.mxu0 0
      %374 = vmatpush1.bf16.msra.mxu0 0
      %375 = vmatprep.subr.bf16.mxu0 0
      %376 = vmatpush1.bf16.msra.mxu0 0
      %377 = vmatprep.subr.bf16.mxu0 0
      %378 = vmatpush1.bf16.msra.mxu0 0
      %379 = vmatprep.subr.bf16.mxu0 0
      %380 = vmatpush1.bf16.msra.mxu0 0
      %381 = vmatprep.subr.bf16.mxu0 0
      %382 = vmatpush1.bf16.msra.mxu0 0
      %383 = vmatprep.subr.bf16.mxu0 0
      %384 = vmatpush1.bf16.msra.mxu0 0
      %385 = vmatprep.mubr.bf16.mxu0 0
      %386 = vmatmul.mubr.bf16.gmra.mrb[0].mxu0 %v291
      %v387 = vpop.f32.mrb[0].mxu0
      %v388 = vadd.f32 %v263, %v387
      %v389 = vpop.f32.mrb[0].mxu0
      %v390 = vpop.f32.mrb[0].mxu0
      %v391 = vadd.f32 %v263, %v390
      %v392 = vpop.f32.mrb[0].mxu0
      %393 = vmatprep.mubr.bf16.mxu0 0
      %394 = vmatmul.mubr.bf16.gmra.mrb[0].mxu0 %v292
      %v395 = vpop.f32.mrb[0].mxu0
      %v396 = vadd.f32 %v263, %v395
      %v397 = vpop.f32.mrb[0].mxu0
      %v398 = vpop.f32.mrb[0].mxu0
      %v399 = vadd.f32 %v263, %v398
      %v400 = vpop.f32.mrb[0].mxu0
      %401 = vmatprep.mubr.bf16.mxu0 0
      %402 = vmatmul.mubr.bf16.gmra.mrb[0].mxu0 %v293
      %v403 = vpop.f32.mrb[0].mxu0
      %v404 = vadd.f32 %v263, %v403
      %v405 = vpop.f32.mrb[0].mxu0
      %v406 = vpop.f32.mrb[0].mxu0
      %v407 = vadd.f32 %v263, %v406
      %v408 = vpop.f32.mrb[0].mxu0
      %409 = vmatprep.mubr.bf16.mxu0 0
      %410 = vmatmul.mubr.bf16.gmra.mrb[0].mxu0 %v294
      %v411 = vpop.f32.mrb[0].mxu0
      %v412 = vadd.f32 %v263, %v411
      %v413 = vpop.f32.mrb[0].mxu0
      %v414 = vpop.f32.mrb[0].mxu0
      %v415 = vadd.f32 %v263, %v414
      %v416 = vpop.f32.mrb[0].mxu0
      %417 = vmatprep.mubr.bf16.mxu0 0
      %418 = vmatmul.mubr.bf16.gmra.mrb[0].mxu0 %v295
      %v419 = vpop.f32.mrb[0].mxu0
      %v420 = vadd.f32 %v263, %v419
      %v421 = vpop.f32.mrb[0].mxu0
      %v422 = vpop.f32.mrb[0].mxu0
      %v423 = vadd.f32 %v263, %v422
      %v424 = vpop.f32.mrb[0].mxu0
      %425 = vmatprep.mubr.bf16.mxu0 0
      %426 = vmatmul.mubr.bf16.gmra.mrb[0].mxu0 %v296
      %v427 = vpop.f32.mrb[0].mxu0
      %v428 = vadd.f32 %v263, %v427
      %v429 = vpop.f32.mrb[0].mxu0
      %v430 = vpop.f32.mrb[0].mxu0
      %v431 = vadd.f32 %v263, %v430
      %v432 = vpop.f32.mrb[0].mxu0
      %433 = vmatprep.mubr.bf16.mxu0 0
      %434 = vmatmul.mubr.bf16.gmra.mrb[0].mxu0 %v297
      %v435 = vpop.f32.mrb[0].mxu0
      %v436 = vadd.f32 %v263, %v435
      %v437 = vpop.f32.mrb[0].mxu0
      %v438 = vpop.f32.mrb[0].mxu0
      %v439 = vpop.f32.mrb[0].mxu0
      %440 = vdwg.mxu0
      %v441 = vmax.f32 %v388, 0.0
      %v442 = vmax.f32 %v391, 0.0
      %v443 = vmax.f32 %v396, 0.0
      %v444 = vmax.f32 %v399, 0.0
      %v445 = vmax.f32 %v404, 0.0
      %v446 = vmax.f32 %v407, 0.0
      %v447 = vmax.f32 %v412, 0.0
      %v448 = vmax.f32 %v415, 0.0
      %v449 = vmax.f32 %v420, 0.0
      %v450 = vmax.f32 %v423, 0.0
      %v451 = vmax.f32 %v428, 0.0
      %v452 = vmax.f32 %v431, 0.0
      %v453 = vmax.f32 %v436, 0.0
      %v454 = vld [vmem:[%s3] sm:$0x1]
      %v456 = vlaneseq
      %v457 = vshrl.u32 %v456, 7
      %v458 = vsub.s32 0, %v457
      %v459 = vrot.slane %v454, %v458
      %v461 = vmul.f32 %v441, %v459
      %v462 = vmul.f32 %v442, %v459
      %v463 = vmul.f32 %v443, %v459
      %v464 = vmul.f32 %v444, %v459
      %v465 = vmul.f32 %v445, %v459
      %v466 = vmul.f32 %v446, %v459
      %v467 = vmul.f32 %v447, %v459
      %v468 = vmul.f32 %v448, %v459
      %v469 = vmul.f32 %v449, %v459
      %v470 = vmul.f32 %v450, %v459
      %v471 = vmul.f32 %v451, %v459
      %v472 = vmul.f32 %v452, %v459
      %v473 = vmul.f32 %v453, %v459
      %v474 = vld [vmem:[%s4] sm:$0x1]
      %v476 = vlaneseq
      %v477 = vshrl.u32 %v476, 7
      %v478 = vsub.s32 0, %v477
      %v479 = vrot.slane %v474, %v478
      %v481 = vadd.f32 %v461, %v479
      %v482 = vadd.f32 %v462, %v479
      %v483 = vadd.f32 %v463, %v479
      %v484 = vadd.f32 %v464, %v479
      %v485 = vadd.f32 %v465, %v479
      %v486 = vadd.f32 %v466, %v479
      %v487 = vadd.f32 %v467, %v479
      %v488 = vadd.f32 %v468, %v479
      %v489 = vadd.f32 %v469, %v479
      %v490 = vadd.f32 %v470, %v479
      %v491 = vadd.f32 %v471, %v479
      %v492 = vadd.f32 %v472, %v479
      %v493 = vadd.f32 %v473, %v479
      %494 = vst [vmem:[%s226] sm:$0xff] %v481
      %495 = vst [vmem:[%s226 + $0x8] sm:$0xff] %v482
      %496 = vst [vmem:[%s226 + $0x10] sm:$0xff] %v483
      %497 = vst [vmem:[%s226 + $0x18] sm:$0xff] %v484
      %498 = vst [vmem:[%s226 + $0x20] sm:$0xff] %v485
      %499 = vst [vmem:[%s226 + $0x28] sm:$0xff] %v486
      %500 = vst [vmem:[%s226 + $0x30] sm:$0xff] %v487
      %501 = vst [vmem:[%s226 + $0x38] sm:$0xff] %v488
      %502 = vst [vmem:[%s226 + $0x40] sm:$0xff] %v489
      %503 = vst [vmem:[%s226 + $0x48] sm:$0xff] %v490
      %504 = vst [vmem:[%s226 + $0x50] sm:$0xff] %v491
      %505 = vst [vmem:[%s226 + $0x58] sm:$0xff] %v492
      %506 = vst [vmem:[%s226 + $0x60] sm:$0xff] %v493
      %s507 = smul.u32 13, %s16
      %p508 = scmp.lt.s32.totalorder %s507, 25
      %s509 = scalar_select %p508, %s507, 25
      %s510 = smul.addr %s509, 8
      %s511 = scalar_lea.vmem %s5, %s510
      // Predicated region
      $region41: #{linear_batchnorm1d_forward.3} parent=39 // pred_check
        %p512 = pneg %p144
      $region42: #{linear_batchnorm1d_forward.3} parent=39 // pred_check_branch
        %514 = sbr.rel (%p512) target = $region44
      $region43: #{linear_batchnorm1d_forward.3} parent=39 // pred_region
        %s515 = smul.u32 13, %s16
      $region44: #{linear_batchnorm1d_forward.3} parent=39 // pred_fallthru
        _
    $region40: #{linear_batchnorm1d_forward.3} parent=5 // pred_fallthru
      _
    %p516 = scmp.le.s32.totalorder 2, %s11
    // Predicated region
    $region45: #{linear_batchnorm1d_forward.3} parent=5 // pred_check
      %p517 = pneg %p516
    $region46: #{linear_batchnorm1d_forward.3} parent=5 // pred_check_branch
      %519 = sbr.rel (%p517) target = $region48
    $region47: #{linear_batchnorm1d_forward.3} parent=5 // pred_region
      %s520 = ssub.s32 %s11, 2
      // Predicated region
      $region49: #{linear_batchnorm1d_forward.3} parent=47 // pred_check
        %p521 = pneg %p150
      $region50: #{linear_batchnorm1d_forward.3} parent=47 // pred_check_branch
        %523 = sbr.rel (%p521) target = $region52
      $region51: #{linear_batchnorm1d_forward.3} parent=47 // pred_region
        %s524 = smul.u32 13, %s17
        %p525 = scmp.lt.s32.totalorder %s524, 25
        %s526 = scalar_select %p525, %s524, 25
        %s527 = smul.addr %s526, 8
        %s528 = scalar_lea.vmem %s5, %s527
      $region52: #{linear_batchnorm1d_forward.3} parent=47 // pred_fallthru
        _
    $region48: #{linear_batchnorm1d_forward.3} parent=5 // pred_fallthru
      _
  $region6: #{linear_batchnorm1d_forward.3} parent=0 // loop_footer
    %s15 = sadd.s32 1, %s11
  $region7: #{linear_batchnorm1d_forward.3} parent=0 // loop_footer_branch
    %10 = sbr.rel target = $region3
  $region8: #{linear_batchnorm1d_forward.3} parent=0 // loop_exit
    _

</llo_original>
